<compile_context>
chip_gen: v5e
topology: v5e:2x2
jax: 0.10.0
libtpu: 0.0.40
codegen_flags: <defaults>
</compile_context>

<pallas_src>
import jax
import jax.numpy as jnp
from jax.experimental import pallas as pl
from jax.experimental.pallas import tpu as pltpu

# ----------------------------- model sizes ---------------------------------
N_FEATURE = 4
HIDDEN = 32
N_OUT = 2

F_PAD = 16       # input features padded 4 -> 16 (bf16 sublane-aligned K)
O_PAD = 128      # final output lane width (lane-dense, unmasked vst)
W_ROWS = 160     # weight slab rows: 16+16+32+32+32+32 (all blocks 16-aligned)


# ------------------------------- kernel ------------------------------------
def _gcn_kernel(a_ref, x_ref, p_ref, w_ref, b_ref, out_ref):
    f32 = jnp.float32
    bf16 = jnp.bfloat16

    a = a_ref[...]                      # (Np, Np)  bf16, integer edge counts
    x = x_ref[...]                      # (Np, F_PAD) bf16
    p = p_ref[...]                      # (Gp, Np)  f32, normalized mean-pool

    # static slices of the packed weight slab (zero-cost ref views)
    wr1 = w_ref[0:16, 0:HIDDEN]         # (16, 32) bf16  (real rows 0:4)
    wo1 = w_ref[16:32, 0:HIDDEN]        # (16, 32)       (real rows 0:4)
    wr2 = w_ref[32:64, 0:HIDDEN]        # (32, 32)
    wo2 = w_ref[64:96, 0:HIDDEN]        # (32, 32)
    wr3f = w_ref[96:128, :]             # (32, 128)  = Wr3 @ Wl  (cols 0:2 real)
    wo3f = w_ref[128:160, :]            # (32, 128)  = Wo3 @ Wl

    b1 = b_ref[0:1, 0:HIDDEN]           # (1, 32) f32
    b2 = b_ref[1:2, 0:HIDDEN]           # (1, 32) f32
    b3f = b_ref[2:3, :]                 # (1, 128) f32 = b3 @ Wl + bl

    # ---- conv1 + ReLU:  (A@x)@Wr1 + x@Wo1 + b1 -----------------------------
    agg1 = jnp.dot(a, x, preferred_element_type=f32)                 # (Np, F_PAD)
    h1 = (jnp.dot(agg1.astype(bf16), wr1, preferred_element_type=f32)
          + jnp.dot(x, wo1, preferred_element_type=f32)
          + b1)
    h1 = jnp.maximum(h1, 0.0)                                        # (Np, H) f32
    h1b = h1.astype(bf16)

    # ---- conv2 + ReLU:  (A@h1)@Wr2 + h1@Wo2 + b2 ---------------------------
    agg2 = jnp.dot(a, h1b, preferred_element_type=f32)               # (Np, H)
    h2 = (jnp.dot(agg2.astype(bf16), wr2, preferred_element_type=f32)
          + jnp.dot(h1b, wo2, preferred_element_type=f32)
          + b2)
    h2 = jnp.maximum(h2, 0.0)                                        # (Np, H) f32
    h2b = h2.astype(bf16)

    # ---- conv3 + global_mean_pool + Linear, algebraically folded ----------
    #   out = (P@(A@h2))@(Wr3@Wl) + (P@h2)@(Wo3@Wl) + (b3@Wl + bl)
    # Pooling kept in f32 (1/count not representable in bf16); dropout p=0.5
    # is the identity in eval mode.
    agg3 = jnp.dot(a, h2b, preferred_element_type=f32)               # (Np, H) f32
    u = jnp.dot(p, agg3, preferred_element_type=f32)                 # (Gp, H) f32
    v = jnp.dot(p, h2, preferred_element_type=f32)                   # (Gp, H) f32
    out_ref[...] = (jnp.dot(u, wr3f, preferred_element_type=f32)
                    + jnp.dot(v, wo3f, preferred_element_type=f32)
                    + b3f)                                           # (Gp, 128)


# ------------------------------ params --------------------------------------
def init_params(key, n_feature, hidden, n_out):
    ks = jax.random.split(key, 11)
    scale = 0.1

    def lin(k, fan_in, fan_out):
        return scale * jax.random.normal(k, (fan_in, fan_out), jnp.float32)

    convs = []
    dims = [(n_feature, hidden), (hidden, hidden), (hidden, hidden)]
    for i, (fi, fo) in enumerate(dims):
        w_rel = lin(ks[3 * i + 0], fi, fo)
        w_root = lin(ks[3 * i + 1], fi, fo)
        b_rel = scale * jax.random.normal(ks[3 * i + 2], (fo,), jnp.float32)
        convs.append((w_rel, w_root, b_rel))
    lin_w = lin(ks[9], hidden, n_out)
    lin_b = scale * jax.random.normal(ks[10], (n_out,), jnp.float32)
    return {"convs": convs, "lin_w": lin_w, "lin_b": lin_b}


def pack_params(params):
    """Pad / fold / cast weights ONCE, off the per-call path.

    All weights go into a single bf16 slab (one DMA) with 16-row-aligned
    blocks; all biases into a single f32 slab (one DMA).
    conv3 is folded with the pooled linear head (valid: no ReLU after conv3).
    """
    (wr1, wo1, b1), (wr2, wo2, b2), (wr3, wo3, b3) = params["convs"]
    wl, bl = params["lin_w"], params["lin_b"]
    f32 = jnp.float32

    wr3f = wr3 @ wl                         # (H, N_OUT)
    wo3f = wo3 @ wl                         # (H, N_OUT)
    b3f = b3 @ wl + bl                      # (N_OUT,)

    wslab = jnp.zeros((W_ROWS, O_PAD), f32)
    wslab = wslab.at[0:N_FEATURE, :HIDDEN].set(wr1)            # rows   0: 16
    wslab = wslab.at[16:16 + N_FEATURE, :HIDDEN].set(wo1)      # rows  16: 32
    wslab = wslab.at[32:64, :HIDDEN].set(wr2)                  # rows  32: 64
    wslab = wslab.at[64:96, :HIDDEN].set(wo2)                  # rows  64: 96
    wslab = wslab.at[96:128, :N_OUT].set(wr3f)                 # rows  96:128
    wslab = wslab.at[128:160, :N_OUT].set(wo3f)                # rows 128:160

    bslab = jnp.zeros((8, O_PAD), f32)
    bslab = bslab.at[0, :HIDDEN].set(b1)
    bslab = bslab.at[1, :HIDDEN].set(b2)
    bslab = bslab.at[2, :N_OUT].set(b3f)

    return {"wslab": wslab.astype(jnp.bfloat16), "bslab": bslab}


# ------------------------------ forward -------------------------------------
def gcn_forward_pallas(x, edge_index, batch, packed, num_graphs):
    n = x.shape[0]
    n_pad = max(16, ((n + 15) // 16) * 16)         # bf16-friendly sublane count
    g_pad = max(8, ((num_graphs + 7) // 8) * 8)

    # TODO(synk): sparse edge_index -> dense A uses an XLA scatter-add in the
    # wrapper (data-dependent scatter has no clean dense-Pallas form here).
    # Built directly at padded shape; integer counts are exact in bf16.
    src, dst = edge_index[0], edge_index[1]
    a_pad = (jnp.zeros((n_pad, n_pad), jnp.float32)
             .at[dst, src].add(1.0)
             .astype(jnp.bfloat16))                # A[i, j] = #edges j -> i

    # Normalized mean-pool matrix, built directly at padded shape, kept in f32
    # (1/count is not bf16-representable). Padded nodes use sentinel graph -1.
    batch_pad = jnp.full((n_pad,), -1, jnp.int32).at[:n].set(batch)
    onehot = (batch_pad[None, :] ==
              jnp.arange(g_pad, dtype=jnp.int32)[:, None]).astype(jnp.float32)
    counts = jnp.maximum(onehot.sum(axis=1, keepdims=True), 1.0)
    p_pad = onehot / counts                        # (Gp, Np) rows sum to 1

    x_pad = (jnp.zeros((n_pad, F_PAD), jnp.bfloat16)
             .at[:n, :N_FEATURE].set(x.astype(jnp.bfloat16)))

    vmem = pl.BlockSpec(memory_space=pltpu.MemorySpace.VMEM)
    # TODO(synk): for many independent graph mini-batches, super-batch along the
    # node dimension (fill the MXU) and/or add a leading "parallel" grid axis
    # (v7x 2-TC sharding); row-tile A by BlockSpec if N grows near the VMEM cap.
    out_pad = pl.pallas_call(
        _gcn_kernel,
        out_shape=jax.ShapeDtypeStruct((g_pad, O_PAD), jnp.float32),
        in_specs=[vmem] * 5,
        out_specs=vmem,
    )(a_pad, x_pad, p_pad, packed["wslab"], packed["bslab"])

    return out_pad[:num_graphs, :N_OUT]


# ------------------------------ reference -----------------------------------
def gcn_forward_ref(x, edge_index, batch, params, num_graphs):
    src, dst = edge_index[0], edge_index[1]
    n = x.shape[0]
    a = jnp.zeros((n, n), jnp.float32).at[dst, src].add(1.0)
    onehot = (batch[None, :] == jnp.arange(num_graphs)[:, None]).astype(jnp.float32)
    p = onehot / jnp.maximum(onehot.sum(axis=1, keepdims=True), 1.0)

    h = x.astype(jnp.float32)
    for i, (w_rel, w_root, b_rel) in enumerate(params["convs"]):
        h = (a @ h) @ w_rel + h @ w_root + b_rel
        if i < 2:
            h = jnp.maximum(h, 0.0)
    g = p @ h
    return g @ params["lin_w"] + params["lin_b"]


# --------------------------------- main -------------------------------------
if __name__ == "__main__":
    key = jax.random.PRNGKey(0)
    k_x, k_p = jax.random.split(key)

    num_graphs = 2
    nodes_per_graph = 8
    n_nodes = num_graphs * nodes_per_graph

    # node features (N, F)
    x = jax.random.normal(k_x, (n_nodes, N_FEATURE), jnp.float32)

    # deterministic edge_index: a bidirectional ring inside each graph
    src, dst = [], []
    for g in range(num_graphs):
        base = g * nodes_per_graph
        for i in range(nodes_per_graph):
            u = base + i
            v = base + (i + 1) % nodes_per_graph
            src += [u, v]
            dst += [v, u]
    edge_index = jnp.array([src, dst], dtype=jnp.int32)   # (2, 32)

    # graph assignment vector
    batch = jnp.repeat(jnp.arange(num_graphs, dtype=jnp.int32), nodes_per_graph)

    params = init_params(k_p, N_FEATURE, HIDDEN, N_OUT)
    packed = pack_params(params)          # done once, off the per-call path

    out = gcn_forward_pallas(x, edge_index, batch, packed, num_graphs)
    out = jax.block_until_ready(out)

    ref = gcn_forward_ref(x, edge_index, batch, params, num_graphs)
    assert out.shape == (num_graphs, N_OUT), out.shape
    assert jnp.allclose(out, ref, rtol=2e-2, atol=2e-2), (out, ref)

    print("KERNEL_OK")
</pallas_src>

<mosaic_0001>
module attributes {stable_mosaic.version = 11 : i64} {
  func.func @_gcn_kernel(%arg0: memref<16x16xbf16, #tpu.memory_space<vmem>>, %arg1: memref<16x16xbf16, #tpu.memory_space<vmem>>, %arg2: memref<8x16xf32, #tpu.memory_space<vmem>>, %arg3: memref<160x128xbf16, #tpu.memory_space<vmem>>, %arg4: memref<8x128xf32, #tpu.memory_space<vmem>>, %arg5: memref<8x128xf32, #tpu.memory_space<vmem>>) attributes {dimension_semantics = [], scalar_prefetch = 0 : i64, scratch_operands = 0 : i64, tpu.core_type = #tpu.core_type<tc>} {
    %c0 = arith.constant 0 : index
    %c0_0 = arith.constant 0 : index
    %0 = vector.load %arg0[%c0, %c0_0] : memref<16x16xbf16, #tpu.memory_space<vmem>>, vector<16x16xbf16>
    %c0_1 = arith.constant 0 : index
    %c0_2 = arith.constant 0 : index
    %1 = vector.load %arg1[%c0_1, %c0_2] : memref<16x16xbf16, #tpu.memory_space<vmem>>, vector<16x16xbf16>
    %c0_3 = arith.constant 0 : index
    %c0_4 = arith.constant 0 : index
    %2 = vector.load %arg2[%c0_3, %c0_4] : memref<8x16xf32, #tpu.memory_space<vmem>>, vector<8x16xf32>
    %c0_5 = arith.constant 0 : index
    %c0_6 = arith.constant 0 : index
    %3 = vector.load %arg3[%c0_5, %c0_6] : memref<160x128xbf16, #tpu.memory_space<vmem>>, vector<16x32xbf16>
    %c16 = arith.constant 16 : index
    %c0_7 = arith.constant 0 : index
    %4 = vector.load %arg3[%c16, %c0_7] : memref<160x128xbf16, #tpu.memory_space<vmem>>, vector<16x32xbf16>
    %c32 = arith.constant 32 : index
    %c0_8 = arith.constant 0 : index
    %5 = vector.load %arg3[%c32, %c0_8] : memref<160x128xbf16, #tpu.memory_space<vmem>>, vector<32x32xbf16>
    %c64 = arith.constant 64 : index
    %c0_9 = arith.constant 0 : index
    %6 = vector.load %arg3[%c64, %c0_9] : memref<160x128xbf16, #tpu.memory_space<vmem>>, vector<32x32xbf16>
    %c96 = arith.constant 96 : index
    %c0_10 = arith.constant 0 : index
    %7 = vector.load %arg3[%c96, %c0_10] : memref<160x128xbf16, #tpu.memory_space<vmem>>, vector<32x128xbf16>
    %c128 = arith.constant 128 : index
    %c0_11 = arith.constant 0 : index
    %8 = vector.load %arg3[%c128, %c0_11] : memref<160x128xbf16, #tpu.memory_space<vmem>>, vector<32x128xbf16>
    %c0_12 = arith.constant 0 : index
    %c0_13 = arith.constant 0 : index
    %9 = vector.load %arg4[%c0_12, %c0_13] : memref<8x128xf32, #tpu.memory_space<vmem>>, vector<1x32xf32>
    %c1 = arith.constant 1 : index
    %c0_14 = arith.constant 0 : index
    %10 = vector.load %arg4[%c1, %c0_14] : memref<8x128xf32, #tpu.memory_space<vmem>>, vector<1x32xf32>
    %c2 = arith.constant 2 : index
    %c0_15 = arith.constant 0 : index
    %11 = vector.load %arg4[%c2, %c0_15] : memref<8x128xf32, #tpu.memory_space<vmem>>, vector<1x128xf32>
    %cst = arith.constant dense<0.000000e+00> : vector<16x16xf32>
    %12 = tpu.matmul %0, %1, %cst {dimension_numbers = #tpu.dot_dimension_numbers<[1], [0], [0], [1], [0, 0, 1, 1], [], []>} : vector<16x16xbf16>, vector<16x16xbf16>, vector<16x16xf32> -> vector<16x16xf32>
    %13 = arith.truncf %12 : vector<16x16xf32> to vector<16x16xbf16>
    %cst_16 = arith.constant dense<0.000000e+00> : vector<16x32xf32>
    %14 = tpu.matmul %13, %3, %cst_16 {dimension_numbers = #tpu.dot_dimension_numbers<[1], [0], [0], [1], [0, 0, 1, 1], [], []>} : vector<16x16xbf16>, vector<16x32xbf16>, vector<16x32xf32> -> vector<16x32xf32>
    %cst_17 = arith.constant dense<0.000000e+00> : vector<16x32xf32>
    %15 = tpu.matmul %1, %4, %cst_17 {dimension_numbers = #tpu.dot_dimension_numbers<[1], [0], [0], [1], [0, 0, 1, 1], [], []>} : vector<16x16xbf16>, vector<16x32xbf16>, vector<16x32xf32> -> vector<16x32xf32>
    %16 = arith.addf %14, %15 : vector<16x32xf32>
    %17 = vector.broadcast %9 : vector<1x32xf32> to vector<16x32xf32>
    %18 = arith.addf %16, %17 : vector<16x32xf32>
    %cst_18 = arith.constant 0.000000e+00 : f32
    %19 = vector.broadcast %cst_18 : f32 to vector<16x32xf32>
    %20 = arith.maximumf %18, %19 : vector<16x32xf32>
    %21 = arith.truncf %20 : vector<16x32xf32> to vector<16x32xbf16>
    %cst_19 = arith.constant dense<0.000000e+00> : vector<16x32xf32>
    %22 = tpu.matmul %0, %21, %cst_19 {dimension_numbers = #tpu.dot_dimension_numbers<[1], [0], [0], [1], [0, 0, 1, 1], [], []>} : vector<16x16xbf16>, vector<16x32xbf16>, vector<16x32xf32> -> vector<16x32xf32>
    %23 = arith.truncf %22 : vector<16x32xf32> to vector<16x32xbf16>
    %cst_20 = arith.constant dense<0.000000e+00> : vector<16x32xf32>
    %24 = tpu.matmul %23, %5, %cst_20 {dimension_numbers = #tpu.dot_dimension_numbers<[1], [0], [0], [1], [0, 0, 1, 1], [], []>} : vector<16x32xbf16>, vector<32x32xbf16>, vector<16x32xf32> -> vector<16x32xf32>
    %cst_21 = arith.constant dense<0.000000e+00> : vector<16x32xf32>
    %25 = tpu.matmul %21, %6, %cst_21 {dimension_numbers = #tpu.dot_dimension_numbers<[1], [0], [0], [1], [0, 0, 1, 1], [], []>} : vector<16x32xbf16>, vector<32x32xbf16>, vector<16x32xf32> -> vector<16x32xf32>
    %26 = arith.addf %24, %25 : vector<16x32xf32>
    %27 = vector.broadcast %10 : vector<1x32xf32> to vector<16x32xf32>
    %28 = arith.addf %26, %27 : vector<16x32xf32>
    %cst_22 = arith.constant 0.000000e+00 : f32
    %29 = vector.broadcast %cst_22 : f32 to vector<16x32xf32>
    %30 = arith.maximumf %28, %29 : vector<16x32xf32>
    %31 = arith.truncf %30 : vector<16x32xf32> to vector<16x32xbf16>
    %cst_23 = arith.constant dense<0.000000e+00> : vector<16x32xf32>
    %32 = tpu.matmul %0, %31, %cst_23 {dimension_numbers = #tpu.dot_dimension_numbers<[1], [0], [0], [1], [0, 0, 1, 1], [], []>} : vector<16x16xbf16>, vector<16x32xbf16>, vector<16x32xf32> -> vector<16x32xf32>
    %cst_24 = arith.constant dense<0.000000e+00> : vector<8x32xf32>
    %33 = tpu.matmul %2, %32, %cst_24 {dimension_numbers = #tpu.dot_dimension_numbers<[1], [0], [0], [1], [0, 0, 1, 1], [], []>} : vector<8x16xf32>, vector<16x32xf32>, vector<8x32xf32> -> vector<8x32xf32>
    %cst_25 = arith.constant dense<0.000000e+00> : vector<8x32xf32>
    %34 = tpu.matmul %2, %30, %cst_25 {dimension_numbers = #tpu.dot_dimension_numbers<[1], [0], [0], [1], [0, 0, 1, 1], [], []>} : vector<8x16xf32>, vector<16x32xf32>, vector<8x32xf32> -> vector<8x32xf32>
    %cst_26 = arith.constant dense<0.000000e+00> : vector<8x128xf32>
    %35 = tpu.matmul %33, %7, %cst_26 {dimension_numbers = #tpu.dot_dimension_numbers<[1], [0], [0], [1], [0, 0, 1, 1], [], []>} : vector<8x32xf32>, vector<32x128xbf16>, vector<8x128xf32> -> vector<8x128xf32>
    %cst_27 = arith.constant dense<0.000000e+00> : vector<8x128xf32>
    %36 = tpu.matmul %34, %8, %cst_27 {dimension_numbers = #tpu.dot_dimension_numbers<[1], [0], [0], [1], [0, 0, 1, 1], [], []>} : vector<8x32xf32>, vector<32x128xbf16>, vector<8x128xf32> -> vector<8x128xf32>
    %37 = arith.addf %35, %36 : vector<8x128xf32>
    %38 = vector.broadcast %11 : vector<1x128xf32> to vector<8x128xf32>
    %39 = arith.addf %37, %38 : vector<8x128xf32>
    %c0_28 = arith.constant 0 : index
    %c0_29 = arith.constant 0 : index
    %40 = vector.load %arg5[%c0_28, %c0_29] : memref<8x128xf32, #tpu.memory_space<vmem>>, vector<8x128xf32>
    tpu.vector_store %arg5[%c0_28, %c0_29], %39 {strides = array<i32>} : memref<8x128xf32, #tpu.memory_space<vmem>>, vector<8x128xf32>,
    return
  }
}

</mosaic_0001>

<llo_original>
// kernel: tpu_custom_call.1
$region0: #{tpu_custom_call.1}
  #allocation0 [shape = 'u32[]', space=smem, size = 0x4, offset = 0x4, fixed_abs, tag = 'smem constant byte address 0x4 - core index']
  #allocation1 [shape = 'u32[72,128]{1,0:T(1,128)}', space=vmem, size = 0x9000, scoped, tag = 'internal scratch']
  %s0 = inlined_call_operand.hbm [shape: bf16[16,16], index: 0, kind: input, shape index: {}]
  %s1 = inlined_call_operand.hbm [shape: bf16[16,16], index: 1, kind: input, shape index: {}]
  %s2 = inlined_call_operand.hbm [shape: f32[8,16], index: 2, kind: input, shape index: {}]
  %s3 = inlined_call_operand.hbm [shape: bf16[160,128], index: 3, kind: input, shape index: {}]
  %s4 = inlined_call_operand.hbm [shape: f32[8,128], index: 4, kind: input, shape index: {}]
  %s5 = inlined_call_operand.hbm [shape: f32[8,128], index: 5, kind: output, shape index: {}]
  %s6 = sld [smem:[#allocation0]]
  $region50: #{tpu_custom_call.1} parent=0
    _
  %s8 = ssub.s32 1, %s6
  %s9 = scalar_select 0, %s8, %s6
  $region1: #{tpu_custom_call.1} parent=0
    #allocation2 [shape = 'u8[4096]{0}', space=vmem, size = 0x1000, scoped, tag = 'input window, operand 0, single buffered']
    #allocation3 [shape = 's32[1]{0}', space=sflag, size = 0x4, scoped, tag = 'scoped memory for tpu_custom_call.1']
    #allocation4 [shape = 's32[1]{0}', space=sflag, size = 0x4, scoped, tag = 'scoped memory for tpu_custom_call.1']
    #allocation5 [shape = 'u8[4096]{0}', space=vmem, size = 0x1000, scoped, tag = 'input window, operand 1, single buffered']
    #allocation6 [shape = 's32[1]{0}', space=sflag, size = 0x4, scoped, tag = 'scoped memory for tpu_custom_call.1']
    #allocation7 [shape = 'u8[4096]{0}', space=vmem, size = 0x1000, scoped, tag = 'input window, operand 2, single buffered']
    #allocation8 [shape = 'u8[40960]{0}', space=vmem, size = 0xa000, scoped, tag = 'input window, operand 3, single buffered']
    #allocation9 [shape = 's32[1]{0}', space=sflag, size = 0x4, scoped, tag = 'scoped memory for tpu_custom_call.1']
    #allocation10 [shape = 'u8[4096]{0}', space=vmem, size = 0x1000, scoped, tag = 'input window, operand 4, single buffered']
    #allocation11 [shape = 'u8[4096]{0}', space=vmem, size = 0x1000, scoped, tag = 'output window, operand 0, single buffered']
    %10 = vsyncpa [#allocation3], 0
    %11 = vsyncpa [#allocation6], 0
    %12 = vsyncpa [#allocation9], 0
    %13 = vsyncpa [#allocation4], 0
    // Predicated region
    $region2: #{tpu_custom_call.1} parent=1 // pred_check
      _
    $region3: #{tpu_custom_call.1} parent=1 // pred_check_branch
      %15 = sbr.rel (0) target = $region5
    $region4: #{tpu_custom_call.1} parent=1 // pred_region
      %17 = vsyncadd [#allocation3], 0
      %s18 = sshll.u32 %s0, 4
      %s19 = int_to_ptr.hbm [resolvable:$true] %s18
      %s20 = sshll.u32 [#allocation2], 4
      %s21 = int_to_ptr.vmem [resolvable:$true] %s20
      %26 = dma.hbm_to_vmem [thread:$0]  %s19, 128, %s21, [#allocation3], 64, 64, 4
    $region5: #{tpu_custom_call.1} parent=1 // pred_fallthru
      _
    // Predicated region
    $region6: #{tpu_custom_call.1} parent=1 // pred_check
      _
    $region7: #{tpu_custom_call.1} parent=1 // pred_check_branch
      %28 = sbr.rel (0) target = $region9
    $region8: #{tpu_custom_call.1} parent=1 // pred_region
      %30 = vsyncadd [#allocation6], 0
      %s31 = sshll.u32 %s1, 4
      %s32 = int_to_ptr.hbm [resolvable:$true] %s31
      %s33 = sshll.u32 [#allocation5], 4
      %s34 = int_to_ptr.vmem [resolvable:$true] %s33
      %39 = dma.hbm_to_vmem [thread:$0]  %s32, 128, %s34, [#allocation6], 64, 64, 4
    $region9: #{tpu_custom_call.1} parent=1 // pred_fallthru
      _
    // Predicated region
    $region10: #{tpu_custom_call.1} parent=1 // pred_check
      _
    $region11: #{tpu_custom_call.1} parent=1 // pred_check_branch
      %41 = sbr.rel (0) target = $region13
    $region12: #{tpu_custom_call.1} parent=1 // pred_region
      %43 = vsyncadd [#allocation6], 0
      %s45 = sshll.u32 %s2, 4
      %s46 = int_to_ptr.hbm [resolvable:$true] %s45
      %s47 = sshll.u32 [#allocation7], 4
      %s48 = int_to_ptr.vmem [resolvable:$true] %s47
      %50 = dma.hbm_to_vmem [thread:$0]  %s46, 128, %s48, [#allocation6]
    $region13: #{tpu_custom_call.1} parent=1 // pred_fallthru
      _
    // Predicated region
    $region14: #{tpu_custom_call.1} parent=1 // pred_check
      _
    $region15: #{tpu_custom_call.1} parent=1 // pred_check_branch
      %52 = sbr.rel (0) target = $region17
    $region16: #{tpu_custom_call.1} parent=1 // pred_region
      %54 = vsyncadd [#allocation9], 0
      %s55 = sshll.u32 %s3, 4
      %s56 = int_to_ptr.hbm [resolvable:$true] %s55
      %s57 = sshll.u32 [#allocation8], 4
      %s58 = int_to_ptr.vmem [resolvable:$true] %s57
      %63 = dma.hbm_to_vmem [thread:$0]  %s56, 1280, %s58, [#allocation9], 64, 64, 4
    $region17: #{tpu_custom_call.1} parent=1 // pred_fallthru
      _
    // Predicated region
    $region18: #{tpu_custom_call.1} parent=1 // pred_check
      _
    $region19: #{tpu_custom_call.1} parent=1 // pred_check_branch
      %65 = sbr.rel (0) target = $region21
    $region20: #{tpu_custom_call.1} parent=1 // pred_region
      %67 = vsyncadd [#allocation9], 0
      %s69 = sshll.u32 %s4, 4
      %s70 = int_to_ptr.hbm [resolvable:$true] %s69
      %s71 = sshll.u32 [#allocation10], 4
      %s72 = int_to_ptr.vmem [resolvable:$true] %s71
      %74 = dma.hbm_to_vmem [thread:$0]  %s70, 128, %s72, [#allocation9]
    $region21: #{tpu_custom_call.1} parent=1 // pred_fallthru
      _
    // Predicated region
    $region22: #{tpu_custom_call.1} parent=1 // pred_check
      _
    $region23: #{tpu_custom_call.1} parent=1 // pred_check_branch
      %76 = sbr.rel (0) target = $region25
    $region24: #{tpu_custom_call.1} parent=1 // pred_region
      %78 = dma.done [#allocation3], 128
    $region25: #{tpu_custom_call.1} parent=1 // pred_fallthru
      _
    // Predicated region
    $region26: #{tpu_custom_call.1} parent=1 // pred_check
      _
    $region27: #{tpu_custom_call.1} parent=1 // pred_check_branch
      %80 = sbr.rel (0) target = $region29
    $region28: #{tpu_custom_call.1} parent=1 // pred_region
      %82 = dma.done [#allocation6], 128
    $region29: #{tpu_custom_call.1} parent=1 // pred_fallthru
      _
    // Predicated region
    $region30: #{tpu_custom_call.1} parent=1 // pred_check
      _
    $region31: #{tpu_custom_call.1} parent=1 // pred_check_branch
      %84 = sbr.rel (0) target = $region33
    $region32: #{tpu_custom_call.1} parent=1 // pred_region
      %86 = dma.done [#allocation6], 128
    $region33: #{tpu_custom_call.1} parent=1 // pred_fallthru
      _
    // Predicated region
    $region34: #{tpu_custom_call.1} parent=1 // pred_check
      _
    $region35: #{tpu_custom_call.1} parent=1 // pred_check_branch
      %88 = sbr.rel (0) target = $region37
    $region36: #{tpu_custom_call.1} parent=1 // pred_region
      %90 = dma.done [#allocation9], 1280
    $region37: #{tpu_custom_call.1} parent=1 // pred_fallthru
      _
    // Predicated region
    $region38: #{tpu_custom_call.1} parent=1 // pred_check
      _
    $region39: #{tpu_custom_call.1} parent=1 // pred_check_branch
      %92 = sbr.rel (0) target = $region41
    $region40: #{tpu_custom_call.1} parent=1 // pred_region
      %94 = dma.done [#allocation9], 128
    $region41: #{tpu_custom_call.1} parent=1 // pred_fallthru
      _
    %v96 = vld [vmem:[#allocation2] sm:$0xf]
    %v97 = vld [vmem:[#allocation2 + $0x4] sm:$0xf]
    %v98 = vld [vmem:[#allocation5] sm:$0xf]
    %v99 = vld [vmem:[#allocation5 + $0x4] sm:$0xf]
    %v100 = vld [vmem:[#allocation7] sm:$0xff]
    %v101 = vld [vmem:[#allocation8] sm:$0xf]
    %v102 = vld [vmem:[#allocation8 + $0x4] sm:$0xf]
    %v103 = vld [vmem:[#allocation8 + $0x8] sm:$0xf]
    %v104 = vld [vmem:[#allocation8 + $0xc] sm:$0xf]
    %v105 = vld [vmem:[#allocation8 + $0x10] sm:$0xf]
    %v106 = vld [vmem:[#allocation8 + $0x14] sm:$0xf]
    %v107 = vld [vmem:[#allocation8 + $0x18] sm:$0xf]
    %v108 = vld [vmem:[#allocation8 + $0x1c] sm:$0xf]
    %v109 = vld [vmem:[#allocation8 + $0x20] sm:$0xf]
    %v110 = vld [vmem:[#allocation8 + $0x24] sm:$0xf]
    %v111 = vld [vmem:[#allocation8 + $0x28] sm:$0xf]
    %v112 = vld [vmem:[#allocation8 + $0x2c] sm:$0xf]
    %v113 = vld [vmem:[#allocation8 + $0x30] sm:$0xf]
    %v114 = vld [vmem:[#allocation8 + $0x34] sm:$0xf]
    %v115 = vld [vmem:[#allocation8 + $0x38] sm:$0xf]
    %v116 = vld [vmem:[#allocation8 + $0x3c] sm:$0xf]
    %v117 = vld [vmem:[#allocation8 + $0x40] sm:$0xf]
    %v118 = vld [vmem:[#allocation8 + $0x44] sm:$0xf]
    %v119 = vld [vmem:[#allocation8 + $0x48] sm:$0xf]
    %v120 = vld [vmem:[#allocation8 + $0x4c] sm:$0xf]
    %v121 = vld [vmem:[#allocation10] sm:$0x1]
    %v122 = vld [vmem:[#allocation10 + $0x1] sm:$0x1]
    %v123 = vld [vmem:[#allocation10 + $0x2] sm:$0x1]
    %v126 = vunpack.c.l.b16 %v96
    %v127 = vunpack.c.l.b16 %v97
    %v128 = vpack.c.b16 %v127, %v126
    %v131 = vunpack.c.l.b16 %v98
    %v132 = vunpack.c.l.b16 %v99
    %v133 = vpack.c.b16 %v132, %v131
    %vm135 = vcmask 130048
    %v137 = vsel %vm135, %v128, 0
    %139 = vmatpush.bf16.msra.mxu0 0
    %140 = vmatpush.bf16.msra.mxu0 0
    %141 = vmatpush.bf16.msra.mxu0 0
    %142 = vmatpush.bf16.msra.mxu0 0
    %143 = vmatpush.bf16.msra.mxu0 0
    %144 = vmatpush.bf16.msra.mxu0 0
    %145 = vmatpush.bf16.msra.mxu0 0
    %146 = vmatpush.bf16.msra.mxu0 %v133
    %147 = vmatmul.bf16.gmra.mxu0 %v137
    %v148 = vpop.f32.mrf.mxu0
    %v149 = vadd.f32 0.0, %v148
    %v150 = vpop.f32.mrf.mxu0
    %v151 = vadd.f32 0.0, %v150
    %152 = vdwg.mxu0
    %v153 = vpack.c.bf16 %v151, %v149
    %v156 = vunpack.c.l.b16 %v103
    %v157 = vunpack.c.l.b16 %v104
    %v158 = vpack.c.b16 %v157, %v156
    %v161 = vsel %vm135, %v133, 0
    %163 = vmatpush.bf16.msra.mxu0 0
    %164 = vmatpush.bf16.msra.mxu0 0
    %165 = vmatpush.bf16.msra.mxu0 0
    %166 = vmatpush.bf16.msra.mxu0 0
    %167 = vmatpush.bf16.msra.mxu0 0
    %168 = vmatpush.bf16.msra.mxu0 0
    %169 = vmatpush.bf16.msra.mxu0 0
    %170 = vmatpush.bf16.msra.mxu0 %v158
    %171 = vmatmul.bf16.gmra.mxu0 %v161
    %v172 = vpop.f32.mrf.mxu0
    %v173 = vadd.f32 0.0, %v172
    %v174 = vpop.f32.mrf.mxu0
    %v175 = vadd.f32 0.0, %v174
    %176 = vdwg.mxu0
    %v179 = vunpack.c.l.b16 %v101
    %v180 = vunpack.c.l.b16 %v102
    %v181 = vpack.c.b16 %v180, %v179
    %v184 = vsel %vm135, %v153, 0
    %186 = vmatpush.bf16.msra.mxu0 0
    %187 = vmatpush.bf16.msra.mxu0 0
    %188 = vmatpush.bf16.msra.mxu0 0
    %189 = vmatpush.bf16.msra.mxu0 0
    %190 = vmatpush.bf16.msra.mxu0 0
    %191 = vmatpush.bf16.msra.mxu0 0
    %192 = vmatpush.bf16.msra.mxu0 0
    %193 = vmatpush.bf16.msra.mxu0 %v181
    %194 = vmatmul.bf16.gmra.mxu0 %v184
    %v195 = vpop.f32.mrf.mxu0
    %v196 = vadd.f32 %v173, %v195
    %v197 = vpop.f32.mrf.mxu0
    %v198 = vadd.f32 %v175, %v197
    %199 = vdwg.mxu0
    %v200 = vperm.slane %v121, 0
    %v201 = vadd.f32 %v196, %v200
    %v202 = vadd.f32 %v198, %v200
    %v203 = vmax.f32 %v201, 0.0
    %v204 = vmax.f32 %v202, 0.0
    %v205 = vpack.c.bf16 %v204, %v203
    %206 = vmatpush.bf16.msra.mxu0 0
    %207 = vmatpush.bf16.msra.mxu0 0
    %208 = vmatpush.bf16.msra.mxu0 0
    %209 = vmatpush.bf16.msra.mxu0 0
    %210 = vmatpush.bf16.msra.mxu0 0
    %211 = vmatpush.bf16.msra.mxu0 0
    %212 = vmatpush.bf16.msra.mxu0 0
    %213 = vmatpush.bf16.msra.mxu0 %v205
    %214 = vmatmul.bf16.gmra.mxu0 %v137
    %v215 = vpop.f32.mrf.mxu0
    %v216 = vadd.f32 0.0, %v215
    %v217 = vpop.f32.mrf.mxu0
    %v218 = vadd.f32 0.0, %v217
    %219 = vdwg.mxu0
    %v220 = vpack.c.bf16 %v218, %v216
    %v225 = vunpack.c.l.b16 %v109
    %v226 = vunpack.c.l.b16 %v110
    %v227 = vunpack.c.l.b16 %v111
    %v228 = vunpack.c.l.b16 %v112
    %v229 = vpack.c.b16 %v226, %v225
    %v230 = vpack.c.b16 %v228, %v227
    %vm233 = vcmask 261120
    %v235 = vsel %vm233, %v205, 0
    %237 = vmatpush.bf16.msra.mxu0 0
    %238 = vmatpush.bf16.msra.mxu0 0
    %239 = vmatpush.bf16.msra.mxu0 0
    %240 = vmatpush.bf16.msra.mxu0 0
    %241 = vmatpush.bf16.msra.mxu0 0
    %242 = vmatpush.bf16.msra.mxu0 0
    %243 = vmatpush.bf16.msra.mxu0 %v230
    %244 = vmatpush.bf16.msra.mxu0 %v229
    %245 = vmatmul.bf16.gmra.mxu0 %v235
    %v246 = vpop.f32.mrf.mxu0
    %v247 = vadd.f32 0.0, %v246
    %v248 = vpop.f32.mrf.mxu0
    %v249 = vadd.f32 0.0, %v248
    %250 = vdwg.mxu0
    %v255 = vunpack.c.l.b16 %v105
    %v256 = vunpack.c.l.b16 %v106
    %v257 = vunpack.c.l.b16 %v107
    %v258 = vunpack.c.l.b16 %v108
    %v259 = vpack.c.b16 %v256, %v255
    %v260 = vpack.c.b16 %v258, %v257
    %v264 = vsel %vm233, %v220, 0
    %266 = vmatpush.bf16.msra.mxu0 0
    %267 = vmatpush.bf16.msra.mxu0 0
    %268 = vmatpush.bf16.msra.mxu0 0
    %269 = vmatpush.bf16.msra.mxu0 0
    %270 = vmatpush.bf16.msra.mxu0 0
    %271 = vmatpush.bf16.msra.mxu0 0
    %272 = vmatpush.bf16.msra.mxu0 %v260
    %273 = vmatpush.bf16.msra.mxu0 %v259
    %274 = vmatmul.bf16.gmra.mxu0 %v264
    %v275 = vpop.f32.mrf.mxu0
    %v276 = vadd.f32 %v247, %v275
    %v277 = vpop.f32.mrf.mxu0
    %v278 = vadd.f32 %v249, %v277
    %279 = vdwg.mxu0
    %v280 = vperm.slane %v122, 0
    %v281 = vadd.f32 %v276, %v280
    %v282 = vadd.f32 %v278, %v280
    %v283 = vmax.f32 %v281, 0.0
    %v284 = vmax.f32 %v282, 0.0
    %v285 = vpack.c.bf16 %v284, %v283
    %286 = vmatpush.bf16.msra.mxu0 0
    %287 = vmatpush.bf16.msra.mxu0 0
    %288 = vmatpush.bf16.msra.mxu0 0
    %289 = vmatpush.bf16.msra.mxu0 0
    %290 = vmatpush.bf16.msra.mxu0 0
    %291 = vmatpush.bf16.msra.mxu0 0
    %292 = vmatpush.bf16.msra.mxu0 0
    %293 = vmatpush.bf16.msra.mxu0 %v285
    %294 = vmatmul.bf16.gmra.mxu0 %v137
    %v295 = vpop.f32.mrf.mxu0
    %v296 = vadd.f32 0.0, %v295
    %v297 = vpop.f32.mrf.mxu0
    %v298 = vadd.f32 0.0, %v297
    %299 = vdwg.mxu0
    %v301 = vsel %vm135, %v100, 0
    %303 = vmatpush.msra.mxu0 0.0
    %304 = vmatpush.msra.mxu0 0.0
    %305 = vmatpush.msra.mxu0 0.0
    %306 = vmatpush.msra.mxu0 0.0
    %307 = vmatpush.msra.mxu0 0.0
    %308 = vmatpush.msra.mxu0 0.0
    %309 = vmatpush.msra.mxu0 0.0
    %310 = vmatpush.msra.mxu0 0.0
    %311 = vmatpush.msra.mxu0 0.0
    %312 = vmatpush.msra.mxu0 0.0
    %313 = vmatpush.msra.mxu0 0.0
    %314 = vmatpush.msra.mxu0 0.0
    %315 = vmatpush.msra.mxu0 0.0
    %316 = vmatpush.msra.mxu0 0.0
    %317 = vmatpush.msra.mxu0 %v298
    %318 = vmatpush.msra.mxu0 %v296
    %319 = vmatmul.f32.gmra.mxu0 %v301
    %v320 = vpop.f32.mrf.mxu0
    %v321 = vadd.f32 0.0, %v320
    %322 = vdwg.mxu0
    %323 = vmatpush.msra.mxu0 0.0
    %324 = vmatpush.msra.mxu0 0.0
    %325 = vmatpush.msra.mxu0 0.0
    %326 = vmatpush.msra.mxu0 0.0
    %327 = vmatpush.msra.mxu0 0.0
    %328 = vmatpush.msra.mxu0 0.0
    %329 = vmatpush.msra.mxu0 0.0
    %330 = vmatpush.msra.mxu0 0.0
    %331 = vmatpush.msra.mxu0 0.0
    %332 = vmatpush.msra.mxu0 0.0
    %333 = vmatpush.msra.mxu0 0.0
    %334 = vmatpush.msra.mxu0 0.0
    %335 = vmatpush.msra.mxu0 0.0
    %336 = vmatpush.msra.mxu0 0.0
    %337 = vmatpush.msra.mxu0 %v284
    %338 = vmatpush.msra.mxu0 %v283
    %339 = vmatmul.f32.gmra.mxu0 %v301
    %v340 = vpop.f32.mrf.mxu0
    %v341 = vadd.f32 0.0, %v340
    %342 = vdwg.mxu0
    %v347 = vunpack.c.l.b16 %v117
    %v348 = vunpack.c.l.b16 %v118
    %v349 = vunpack.c.l.b16 %v119
    %v350 = vunpack.c.l.b16 %v120
    %v351 = vpack.c.b16 %v348, %v347
    %v352 = vpack.c.b16 %v350, %v349
    %v356 = vsel %vm233, %v341, 0
    %358 = vmatpush.bf16.msra.mxu0 0
    %359 = vmatpush.bf16.msra.mxu0 0
    %360 = vmatpush.bf16.msra.mxu0 0
    %361 = vmatpush.bf16.msra.mxu0 0
    %362 = vmatpush.bf16.msra.mxu0 0
    %363 = vmatpush.bf16.msra.mxu0 0
    %364 = vmatpush.bf16.msra.mxu0 %v352
    %365 = vmatpush.bf16.msra.mxu0 %v351
    %366 = vmatmul.f32.gmra.mxu0 %v356
    %v367 = vpop.f32.mrf.mxu0
    %v368 = vadd.f32 0.0, %v367
    %369 = vdwg.mxu0
    %v374 = vunpack.c.l.b16 %v113
    %v375 = vunpack.c.l.b16 %v114
    %v376 = vunpack.c.l.b16 %v115
    %v377 = vunpack.c.l.b16 %v116
    %v378 = vpack.c.b16 %v375, %v374
    %v379 = vpack.c.b16 %v377, %v376
    %v383 = vsel %vm233, %v321, 0
    %385 = vmatpush.bf16.msra.mxu0 0
    %386 = vmatpush.bf16.msra.mxu0 0
    %387 = vmatpush.bf16.msra.mxu0 0
    %388 = vmatpush.bf16.msra.mxu0 0
    %389 = vmatpush.bf16.msra.mxu0 0
    %390 = vmatpush.bf16.msra.mxu0 0
    %391 = vmatpush.bf16.msra.mxu0 %v379
    %392 = vmatpush.bf16.msra.mxu0 %v378
    %393 = vmatmul.f32.gmra.mxu0 %v383
    %v394 = vpop.f32.mrf.mxu0
    %v395 = vadd.f32 %v368, %v394
    %396 = vdwg.mxu0
    %v397 = vperm.slane %v123, 0
    %v398 = vadd.f32 %v395, %v397
    %399 = vst [vmem:[#allocation11] sm:$0xff] %v398
    // Predicated region
    $region42: #{tpu_custom_call.1} parent=1 // pred_check
      _
    $region43: #{tpu_custom_call.1} parent=1 // pred_check_branch
      %401 = sbr.rel (0) target = $region45
    $region44: #{tpu_custom_call.1} parent=1 // pred_region
      %403 = vsyncadd [#allocation4], 0
      %s405 = sshll.u32 [#allocation11], 4
      %s406 = int_to_ptr.vmem [resolvable:$true] %s405
      %s407 = sshll.u32 %s5, 4
      %s408 = int_to_ptr.hbm [resolvable:$true] %s407
      %410 = dma.vmem_to_hbm [thread:$0]  %s406, 128, %s408, [#allocation4]
    $region45: #{tpu_custom_call.1} parent=1 // pred_fallthru
      _
    // Predicated region
    $region46: #{tpu_custom_call.1} parent=1 // pred_check
      _
    $region47: #{tpu_custom_call.1} parent=1 // pred_check_branch
      %412 = sbr.rel (0) target = $region49
    $region48: #{tpu_custom_call.1} parent=1 // pred_region
      %414 = dma.done [#allocation4], 128
    $region49: #{tpu_custom_call.1} parent=1 // pred_fallthru
      _
    %415 = vsyncpa [#allocation3], 1
    %416 = vsyncpa [#allocation6], 1
    %417 = vsyncpa [#allocation9], 1
    %418 = vsyncpa [#allocation4], 1

</llo_original>
